<compile_context>
chip_gen: v7x
topology: tpu7x:2x2x1
jax: 0.10.0
libtpu: 0.0.40
codegen_flags: <defaults>
</compile_context>

<pallas_src>
import math
from functools import partial

import jax
import jax.numpy as jnp
from jax.experimental import pallas as pl
from jax.experimental.pallas import tpu as pltpu
from jax.scipy.special import digamma as jsp_digamma, gammaln as jsp_gammaln

_DEF_ANNEAL_STEP = 10
_HALF_LOG_2PI = 0.9189385332046727  # 0.5 * log(2*pi)
_LANE = 128


# ----------------------------- in-kernel special functions ------------------


def _recip(x):
    """Newton-refined EUP reciprocal (~f32-exact, cheaper than a full divide)."""
    r = pl.reciprocal(x, approx=True)
    return r * (2.0 - x * r)


def _digamma_lgamma(x, *, want_lgamma=True):
    """(digamma(x), lgamma(x)) for x >= 1.

    Shift the argument by 6 (z = x + 6 >= 7) and use the asymptotic series.
    The six shift terms are folded into a single product q = x(x+1)...(x+5)
    shared between digamma and lgamma, so a fused eval costs 2 logs + 2
    reciprocals on the bottleneck EUP slot (digamma-only: 1 log + 2 recips).
    NOTE: q ~ x^6 -> f32-safe for x up to ~2e6 (plenty for EDL evidence).
    """
    w = x + 3.0
    p1 = x * (x + 1.0) * (x + 2.0)          # x(x+1)(x+2)
    p2 = w * (w + 1.0) * (w + 2.0)          # (x+3)(x+4)(x+5)
    q = p1 * p2                             # x(x+1)...(x+5)
    n1 = (3.0 * x + 6.0) * x + 2.0          # p1 * (1/x + 1/(x+1) + 1/(x+2))
    n2 = (3.0 * w + 6.0) * w + 2.0
    z = x + 6.0
    zi = _recip(z)
    zi2 = zi * zi
    log_z = jnp.log(z)

    shift = (n1 * p2 + n2 * p1) * _recip(q)          # sum_{i=0..5} 1/(x+i)
    dg_tail = zi2 * (1.0 / 12.0 - zi2 * (1.0 / 120.0 - zi2 * (1.0 / 252.0)))
    dg = log_z - 0.5 * zi - dg_tail - shift
    if not want_lgamma:
        return dg, None

    lg_series = zi * (1.0 / 12.0 + zi2 * (-1.0 / 360.0 + zi2 * (1.0 / 1260.0)))
    lg = (z - 0.5) * log_z - z + _HALF_LOG_2PI + lg_series - jnp.log(q)
    return dg, lg


def _ksum(terms):
    acc = terms[0]
    for t in terms[1:]:
        acc = acc + t
    return acc


# ----------------------------------- kernel ---------------------------------


def _edl_kernel(coef_ref, alpha_ref, label_ref, out_ref, *, lnB_uni):
    j = pl.program_id(1)

    @pl.when(j == 0)
    def _():
        out_ref[...] = jnp.zeros_like(out_ref)

    alpha = alpha_ref[...]                  # (K, TR, 128) f32, alpha >= 1
    labels = label_ref[...]                 # (TR, 128) int32, -1 marks padded rows
    K, TR, _ = alpha.shape

    # fused digamma + lgamma of alpha (shared argument shift)
    dg_a, lg_a = _digamma_lgamma(alpha)

    # Per-class one-hot masks (lane-aligned compares; -1 padding -> all zeros).
    # K is fixed at 2 by the module spec (F.one_hot(..., num_classes=2)); for
    # large K this unrolled form would be rewritten with closed-form
    # full-sum-minus-label-term identities to keep temporaries O(1) in K.
    tgt = [(labels == k).astype(jnp.float32) for k in range(K)]

    S = _ksum([alpha[k] for k in range(K)])                   # sum_k alpha_k
    t_sum = _ksum(tgt)                                        # 1 valid / 0 padded
    t_alpha = _ksum([tgt[k] * alpha[k] for k in range(K)])    # alpha[label]
    t_dga = _ksum([tgt[k] * dg_a[k] for k in range(K)])       # digamma(alpha[label])

    dg_S, _ = _digamma_lgamma(S, want_lgamma=False)

    # func(alpha, target): EDL digamma data term, summed over classes per row.
    A = dg_S * t_sum - t_dga

    # KL(Dir(kl_alpha) || Dir(1)) with kl_alpha = (alpha-1)*(1-target)+1:
    # kl_alpha == alpha where target==0 and == 1 where target==1, so reuse the
    # digamma/lgamma of alpha instead of re-evaluating them on kl_alpha.
    S_a = S - t_alpha + t_sum                                 # sum_k kl_alpha_k
    dg_Sa, lg_Sa = _digamma_lgamma(S_a)

    lnB_off = _ksum([(1.0 - tgt[k]) * lg_a[k] for k in range(K)])
    kl_core = _ksum([(1.0 - tgt[k]) * (alpha[k] - 1.0) * (dg_a[k] - dg_Sa)
                     for k in range(K)])
    kl = kl_core + (lg_Sa - lnB_off) + lnB_uni

    partial = A + coef_ref[0] * kl                            # (TR, 128)
    # Fold the per-step partial to (8,128) on the VPU (a few vreg adds, free
    # next to the EUP work) so the resident output + HBM writeback stays 8
    # rows per core instead of TR, and the wrapper only reduces a tiny slab.
    out_ref[...] += jnp.sum(partial.reshape(TR // 8, 8, _LANE), axis=0)


# ---------------------------------- wrapper ---------------------------------


def _round_up(x, m):
    return ((x + m - 1) // m) * m


def _device_kind():
    try:
        return jax.devices()[0].device_kind.lower()
    except Exception:
        return ""


def _default_tiling():
    """(core_splits, tile_rows) per TPU generation.

    v7x has 2 TensorCores per chip -> shard rows across them; v5e/v6e are
    single-core, so the extra grid axis would only add padding and per-step
    overhead.  Bigger row tiles on v6e/v7x amortize the ~0.35us step cost.
    """
    kind = _device_kind()
    two_core = ("v7" in kind) or ("7x" in kind)
    big_tiles = two_core or ("v6" in kind)
    return (2 if two_core else 1), (1024 if big_tiles else 512)


def edl_loss(alpha, target, epoch, annealing_step=_DEF_ANNEAL_STEP, *,
             tile_rows=None, core_splits=None):
    """alpha: (B, N, K) float with alpha >= 1, target: (B, N) int labels in [0, K)."""
    B, N, K = alpha.shape
    M = B * N

    auto_splits, auto_tr = _default_tiling()
    if core_splits is None:
        core_splits = auto_splits
    if tile_rows is None:
        tile_rows = auto_tr

    G = pl.cdiv(M, _LANE)                                    # 128-row groups
    TR = max(8, min(_round_up(tile_rows, 8),
                    _round_up(pl.cdiv(G, core_splits), 8)))
    # With plenty of rows, keep >=2 blocks per core so each core's input DMA
    # still double-buffers instead of running one giant un-pipelined step.
    if core_splits > 1 and pl.cdiv(G, TR * core_splits) < 2 and G > 16 * core_splits:
        TR = max(8, _round_up(pl.cdiv(G, 2 * core_splits), 8))
    blocks_per_core = pl.cdiv(G, TR * core_splits)
    G_pad = core_splits * blocks_per_core * TR
    M_pad = G_pad * _LANE

    alpha_flat = alpha.reshape(M, K).astype(jnp.float32)
    labels_flat = target.reshape(M).astype(jnp.int32)
    if M_pad != M:
        # padded rows (alpha=1, label=-1) contribute exactly zero loss
        alpha_flat = jnp.concatenate(
            [alpha_flat, jnp.ones((M_pad - M, K), jnp.float32)], axis=0)
        labels_flat = jnp.concatenate(
            [labels_flat, jnp.full((M_pad - M,), -1, jnp.int32)], axis=0)

    # Class-major (K, G_pad, 128) relayout so rows are lane-dense in-kernel.
    # TODO(synk): this is still one extra XLA HBM pass over alpha (mainly a
    # v5e concern); an in-kernel deinterleave would need a lane-stride-2 load
    # (not lowerable by Mosaic) or would double the EUP-bound digamma(S)/
    # digamma(S_a) work in interleaved layout, so the relayout stays in XLA.
    alpha_kgl = alpha_flat.reshape(G_pad, _LANE, K).transpose(2, 0, 1)
    labels_gl = labels_flat.reshape(G_pad, _LANE)

    coef = jnp.array([min(1.0, epoch / annealing_step)], dtype=jnp.float32)
    # beta == ones(1, K): lnB_uni = sum(lgamma(1)) - lgamma(K), a static scalar
    lnB_uni = float(K * math.lgamma(1.0) - math.lgamma(float(K)))

    kernel = partial(_edl_kernel, lnB_uni=lnB_uni)

    out = pl.pallas_call(
        kernel,
        out_shape=jax.ShapeDtypeStruct((core_splits * 8, _LANE), jnp.float32),
        grid_spec=pltpu.PrefetchScalarGridSpec(
            num_scalar_prefetch=0,
            grid=(core_splits, blocks_per_core),
            in_specs=[
                pl.BlockSpec(memory_space=pltpu.SMEM),                        # coef
                pl.BlockSpec((K, TR, _LANE),
                             lambda c, j: (0, c * blocks_per_core + j, 0)),   # alpha
                pl.BlockSpec((TR, _LANE),
                             lambda c, j: (c * blocks_per_core + j, 0)),      # labels
            ],
            out_specs=pl.BlockSpec((8, _LANE), lambda c, j: (c, 0)),          # partials
        ),
        compiler_params=pltpu.CompilerParams(
            dimension_semantics=("parallel", "arbitrary"),
            vmem_limit_bytes=48 * 1024 * 1024),
    )(coef, alpha_kgl, labels_gl)

    # reduce the tiny (core_splits*8, 128) slab + mean over the true row count
    return jnp.sum(out) / jnp.float32(M)


# --------------------------- pure-JAX reference ------------------------------


def edl_loss_ref(alpha, target, epoch, annealing_step=_DEF_ANNEAL_STEP):
    B, N, K = alpha.shape
    y = jax.nn.one_hot(target.astype(jnp.int32), K, dtype=jnp.float32).reshape(-1, K)
    a = alpha.reshape(-1, K).astype(jnp.float32)
    S = jnp.sum(a, axis=1, keepdims=True)
    A = jnp.sum(y * (jsp_digamma(S) - jsp_digamma(a)), axis=1, keepdims=True)
    coef = min(1.0, epoch / annealing_step)
    ka = (a - 1.0) * (1.0 - y) + 1.0
    beta = jnp.ones((1, K), jnp.float32)
    Sa = jnp.sum(ka, axis=1, keepdims=True)
    Sb = jnp.sum(beta, axis=1, keepdims=True)
    lnB = jsp_gammaln(Sa) - jnp.sum(jsp_gammaln(ka), axis=1, keepdims=True)
    lnB_uni = jnp.sum(jsp_gammaln(beta), axis=1, keepdims=True) - jsp_gammaln(Sb)
    dg0 = jsp_digamma(Sa)
    dg1 = jsp_digamma(ka)
    kl = jnp.sum((ka - beta) * (dg1 - dg0), axis=1, keepdims=True) + lnB + lnB_uni
    return jnp.mean(A + coef * kl)


# ------------------------------------ main -----------------------------------

if __name__ == "__main__":
    key = jax.random.PRNGKey(0)
    k1, k2 = jax.random.split(key)

    B, N, K = 2, 128, 2          # target.ndim == 3 after one_hot -> alpha (B, N, 2)
    epoch = 3

    # alpha = evidence + 1 (standard EDL parameterization, guarantees alpha >= 1)
    evidence = jax.nn.relu(jax.random.normal(k1, (B, N, K), dtype=jnp.float32))
    alpha = evidence + 1.0
    target = jax.random.randint(k2, (B, N), 0, K, dtype=jnp.int32)

    loss = edl_loss(alpha, target, epoch)
    loss = jax.block_until_ready(loss)

    ref = edl_loss_ref(alpha, target, epoch)
    assert jnp.allclose(loss, ref, rtol=1e-4, atol=1e-4), (loss, ref)

    print("KERNEL_OK")
</pallas_src>

<mosaic_0001>
module attributes {stable_mosaic.version = 11 : i64} {
  func.func @_edl_kernel(%arg0: i32, %arg1: i32, %arg2: memref<1xf32, #tpu.memory_space<smem>>, %arg3: memref<2x8x128xf32, #tpu.memory_space<vmem>>, %arg4: memref<8x128xi32, #tpu.memory_space<vmem>>, %arg5: memref<8x128xf32, #tpu.memory_space<vmem>>) attributes {dimension_semantics = [#tpu.dimension_semantics<parallel>, #tpu.dimension_semantics<arbitrary>], iteration_bounds = array<i64: 1, 1>, scalar_prefetch = 0 : i64, scratch_operands = 0 : i64, tpu.core_type = #tpu.core_type<tc>, window_params = [{transform_indices = @transform_0, window_bounds = array<i64: 1>}, {transform_indices = @transform_1, window_bounds = array<i64: 2, 8, 128>}, {transform_indices = @transform_2, window_bounds = array<i64: 8, 128>}, {transform_indices = @transform_3, window_bounds = array<i64: 8, 128>}]} {
    %c0_i32 = arith.constant 0 : i32
    %0 = arith.cmpi eq, %arg1, %c0_i32 : i32
    %1 = arith.extui %0 : i1 to i32
    %c0_i32_0 = arith.constant 0 : i32
    %2 = arith.cmpi ne, %1, %c0_i32_0 : i32
    scf.if %2 {
      %cst_82 = arith.constant 0.000000e+00 : f32
      %298 = vector.broadcast %cst_82 : f32 to vector<8x128xf32>
      %c0_83 = arith.constant 0 : index
      %c0_84 = arith.constant 0 : index
      %299 = vector.load %arg5[%c0_83, %c0_84] : memref<8x128xf32, #tpu.memory_space<vmem>>, vector<8x128xf32>
      tpu.vector_store %arg5[%c0_83, %c0_84], %298 {strides = array<i32>} : memref<8x128xf32, #tpu.memory_space<vmem>>, vector<8x128xf32>,
    } else {
    }
    %c0 = arith.constant 0 : index
    %c0_1 = arith.constant 0 : index
    %c0_2 = arith.constant 0 : index
    %3 = vector.load %arg3[%c0, %c0_1, %c0_2] : memref<2x8x128xf32, #tpu.memory_space<vmem>>, vector<2x8x128xf32>
    %c0_3 = arith.constant 0 : index
    %c0_4 = arith.constant 0 : index
    %4 = vector.load %arg4[%c0_3, %c0_4] : memref<8x128xi32, #tpu.memory_space<vmem>>, vector<8x128xi32>
    %cst = arith.constant 3.000000e+00 : f32
    %5 = vector.broadcast %cst : f32 to vector<2x8x128xf32>
    %6 = arith.addf %3, %5 : vector<2x8x128xf32>
    %cst_5 = arith.constant 1.000000e+00 : f32
    %7 = vector.broadcast %cst_5 : f32 to vector<2x8x128xf32>
    %8 = arith.addf %3, %7 : vector<2x8x128xf32>
    %9 = arith.mulf %3, %8 : vector<2x8x128xf32>
    %cst_6 = arith.constant 2.000000e+00 : f32
    %10 = vector.broadcast %cst_6 : f32 to vector<2x8x128xf32>
    %11 = arith.addf %3, %10 : vector<2x8x128xf32>
    %12 = arith.mulf %9, %11 : vector<2x8x128xf32>
    %cst_7 = arith.constant 1.000000e+00 : f32
    %13 = vector.broadcast %cst_7 : f32 to vector<2x8x128xf32>
    %14 = arith.addf %6, %13 : vector<2x8x128xf32>
    %15 = arith.mulf %6, %14 : vector<2x8x128xf32>
    %cst_8 = arith.constant 2.000000e+00 : f32
    %16 = vector.broadcast %cst_8 : f32 to vector<2x8x128xf32>
    %17 = arith.addf %6, %16 : vector<2x8x128xf32>
    %18 = arith.mulf %15, %17 : vector<2x8x128xf32>
    %19 = arith.mulf %12, %18 : vector<2x8x128xf32>
    %cst_9 = arith.constant 3.000000e+00 : f32
    %20 = vector.broadcast %cst_9 : f32 to vector<2x8x128xf32>
    %21 = arith.mulf %20, %3 : vector<2x8x128xf32>
    %cst_10 = arith.constant 6.000000e+00 : f32
    %22 = vector.broadcast %cst_10 : f32 to vector<2x8x128xf32>
    %23 = arith.addf %21, %22 : vector<2x8x128xf32>
    %24 = arith.mulf %23, %3 : vector<2x8x128xf32>
    %cst_11 = arith.constant 2.000000e+00 : f32
    %25 = vector.broadcast %cst_11 : f32 to vector<2x8x128xf32>
    %26 = arith.addf %24, %25 : vector<2x8x128xf32>
    %cst_12 = arith.constant 3.000000e+00 : f32
    %27 = vector.broadcast %cst_12 : f32 to vector<2x8x128xf32>
    %28 = arith.mulf %27, %6 : vector<2x8x128xf32>
    %cst_13 = arith.constant 6.000000e+00 : f32
    %29 = vector.broadcast %cst_13 : f32 to vector<2x8x128xf32>
    %30 = arith.addf %28, %29 : vector<2x8x128xf32>
    %31 = arith.mulf %30, %6 : vector<2x8x128xf32>
    %cst_14 = arith.constant 2.000000e+00 : f32
    %32 = vector.broadcast %cst_14 : f32 to vector<2x8x128xf32>
    %33 = arith.addf %31, %32 : vector<2x8x128xf32>
    %cst_15 = arith.constant 6.000000e+00 : f32
    %34 = vector.broadcast %cst_15 : f32 to vector<2x8x128xf32>
    %35 = arith.addf %3, %34 : vector<2x8x128xf32>
    %36 = tpu.reciprocal %35 {approx = true} : vector<2x8x128xf32> -> vector<2x8x128xf32>
    %37 = arith.mulf %35, %36 : vector<2x8x128xf32>
    %cst_16 = arith.constant 2.000000e+00 : f32
    %38 = vector.broadcast %cst_16 : f32 to vector<2x8x128xf32>
    %39 = arith.subf %38, %37 : vector<2x8x128xf32>
    %40 = arith.mulf %36, %39 : vector<2x8x128xf32>
    %41 = arith.mulf %40, %40 : vector<2x8x128xf32>
    %42 = math.log %35 : vector<2x8x128xf32>
    %43 = arith.mulf %26, %18 : vector<2x8x128xf32>
    %44 = arith.mulf %33, %12 : vector<2x8x128xf32>
    %45 = arith.addf %43, %44 : vector<2x8x128xf32>
    %46 = tpu.reciprocal %19 {approx = true} : vector<2x8x128xf32> -> vector<2x8x128xf32>
    %47 = arith.mulf %19, %46 : vector<2x8x128xf32>
    %cst_17 = arith.constant 2.000000e+00 : f32
    %48 = vector.broadcast %cst_17 : f32 to vector<2x8x128xf32>
    %49 = arith.subf %48, %47 : vector<2x8x128xf32>
    %50 = arith.mulf %46, %49 : vector<2x8x128xf32>
    %51 = arith.mulf %45, %50 : vector<2x8x128xf32>
    %cst_18 = arith.constant 0.0039682542 : f32
    %52 = vector.broadcast %cst_18 : f32 to vector<2x8x128xf32>
    %53 = arith.mulf %41, %52 : vector<2x8x128xf32>
    %cst_19 = arith.constant 0.00833333377 : f32
    %54 = vector.broadcast %cst_19 : f32 to vector<2x8x128xf32>
    %55 = arith.subf %54, %53 : vector<2x8x128xf32>
    %56 = arith.mulf %41, %55 : vector<2x8x128xf32>
    %cst_20 = arith.constant 0.0833333358 : f32
    %57 = vector.broadcast %cst_20 : f32 to vector<2x8x128xf32>
    %58 = arith.subf %57, %56 : vector<2x8x128xf32>
    %59 = arith.mulf %41, %58 : vector<2x8x128xf32>
    %cst_21 = arith.constant 5.000000e-01 : f32
    %60 = vector.broadcast %cst_21 : f32 to vector<2x8x128xf32>
    %61 = arith.mulf %60, %40 : vector<2x8x128xf32>
    %62 = arith.subf %42, %61 : vector<2x8x128xf32>
    %63 = arith.subf %62, %59 : vector<2x8x128xf32>
    %64 = arith.subf %63, %51 : vector<2x8x128xf32>
    %cst_22 = arith.constant 7.93650805E-4 : f32
    %65 = vector.broadcast %cst_22 : f32 to vector<2x8x128xf32>
    %66 = arith.mulf %41, %65 : vector<2x8x128xf32>
    %cst_23 = arith.constant -0.00277777785 : f32
    %67 = vector.broadcast %cst_23 : f32 to vector<2x8x128xf32>
    %68 = arith.addf %67, %66 : vector<2x8x128xf32>
    %69 = arith.mulf %41, %68 : vector<2x8x128xf32>
    %cst_24 = arith.constant 0.0833333358 : f32
    %70 = vector.broadcast %cst_24 : f32 to vector<2x8x128xf32>
    %71 = arith.addf %70, %69 : vector<2x8x128xf32>
    %72 = arith.mulf %40, %71 : vector<2x8x128xf32>
    %cst_25 = arith.constant 5.000000e-01 : f32
    %73 = vector.broadcast %cst_25 : f32 to vector<2x8x128xf32>
    %74 = arith.subf %35, %73 : vector<2x8x128xf32>
    %75 = arith.mulf %74, %42 : vector<2x8x128xf32>
    %76 = arith.subf %75, %35 : vector<2x8x128xf32>
    %cst_26 = arith.constant 0.918938517 : f32
    %77 = vector.broadcast %cst_26 : f32 to vector<2x8x128xf32>
    %78 = arith.addf %76, %77 : vector<2x8x128xf32>
    %79 = arith.addf %78, %72 : vector<2x8x128xf32>
    %80 = math.log %19 : vector<2x8x128xf32>
    %81 = arith.subf %79, %80 : vector<2x8x128xf32>
    %c0_i32_27 = arith.constant 0 : i32
    %82 = vector.broadcast %c0_i32_27 : i32 to vector<8x128xi32>
    %83 = arith.cmpi eq, %4, %82 : vector<8x128xi32>
    %84 = arith.extui %83 : vector<8x128xi1> to vector<8x128xi32>
    %85 = arith.sitofp %84 : vector<8x128xi32> to vector<8x128xf32>
    %c1_i32 = arith.constant 1 : i32
    %86 = vector.broadcast %c1_i32 : i32 to vector<8x128xi32>
    %87 = arith.cmpi eq, %4, %86 : vector<8x128xi32>
    %88 = arith.extui %87 : vector<8x128xi1> to vector<8x128xi32>
    %89 = arith.sitofp %88 : vector<8x128xi32> to vector<8x128xf32>
    %90 = vector.extract_strided_slice %3 {offsets = [0, 0, 0], sizes = [1, 8, 128], strides = [1, 1, 1]} : vector<2x8x128xf32> to vector<1x8x128xf32>
    %91 = vector.shape_cast %90 : vector<1x8x128xf32> to vector<8x128xf32>
    %92 = vector.extract_strided_slice %3 {offsets = [1, 0, 0], sizes = [1, 8, 128], strides = [1, 1, 1]} : vector<2x8x128xf32> to vector<1x8x128xf32>
    %93 = vector.shape_cast %92 : vector<1x8x128xf32> to vector<8x128xf32>
    %94 = arith.addf %91, %93 : vector<8x128xf32>
    %95 = arith.addf %85, %89 : vector<8x128xf32>
    %96 = vector.extract_strided_slice %3 {offsets = [0, 0, 0], sizes = [1, 8, 128], strides = [1, 1, 1]} : vector<2x8x128xf32> to vector<1x8x128xf32>
    %97 = vector.shape_cast %96 : vector<1x8x128xf32> to vector<8x128xf32>
    %98 = arith.mulf %85, %97 : vector<8x128xf32>
    %99 = vector.extract_strided_slice %3 {offsets = [1, 0, 0], sizes = [1, 8, 128], strides = [1, 1, 1]} : vector<2x8x128xf32> to vector<1x8x128xf32>
    %100 = vector.shape_cast %99 : vector<1x8x128xf32> to vector<8x128xf32>
    %101 = arith.mulf %89, %100 : vector<8x128xf32>
    %102 = arith.addf %98, %101 : vector<8x128xf32>
    %103 = vector.extract_strided_slice %64 {offsets = [0, 0, 0], sizes = [1, 8, 128], strides = [1, 1, 1]} : vector<2x8x128xf32> to vector<1x8x128xf32>
    %104 = vector.shape_cast %103 : vector<1x8x128xf32> to vector<8x128xf32>
    %105 = arith.mulf %85, %104 : vector<8x128xf32>
    %106 = vector.extract_strided_slice %64 {offsets = [1, 0, 0], sizes = [1, 8, 128], strides = [1, 1, 1]} : vector<2x8x128xf32> to vector<1x8x128xf32>
    %107 = vector.shape_cast %106 : vector<1x8x128xf32> to vector<8x128xf32>
    %108 = arith.mulf %89, %107 : vector<8x128xf32>
    %109 = arith.addf %105, %108 : vector<8x128xf32>
    %cst_28 = arith.constant 3.000000e+00 : f32
    %110 = vector.broadcast %cst_28 : f32 to vector<8x128xf32>
    %111 = arith.addf %94, %110 : vector<8x128xf32>
    %cst_29 = arith.constant 1.000000e+00 : f32
    %112 = vector.broadcast %cst_29 : f32 to vector<8x128xf32>
    %113 = arith.addf %94, %112 : vector<8x128xf32>
    %114 = arith.mulf %94, %113 : vector<8x128xf32>
    %cst_30 = arith.constant 2.000000e+00 : f32
    %115 = vector.broadcast %cst_30 : f32 to vector<8x128xf32>
    %116 = arith.addf %94, %115 : vector<8x128xf32>
    %117 = arith.mulf %114, %116 : vector<8x128xf32>
    %cst_31 = arith.constant 1.000000e+00 : f32
    %118 = vector.broadcast %cst_31 : f32 to vector<8x128xf32>
    %119 = arith.addf %111, %118 : vector<8x128xf32>
    %120 = arith.mulf %111, %119 : vector<8x128xf32>
    %cst_32 = arith.constant 2.000000e+00 : f32
    %121 = vector.broadcast %cst_32 : f32 to vector<8x128xf32>
    %122 = arith.addf %111, %121 : vector<8x128xf32>
    %123 = arith.mulf %120, %122 : vector<8x128xf32>
    %124 = arith.mulf %117, %123 : vector<8x128xf32>
    %cst_33 = arith.constant 3.000000e+00 : f32
    %125 = vector.broadcast %cst_33 : f32 to vector<8x128xf32>
    %126 = arith.mulf %125, %94 : vector<8x128xf32>
    %cst_34 = arith.constant 6.000000e+00 : f32
    %127 = vector.broadcast %cst_34 : f32 to vector<8x128xf32>
    %128 = arith.addf %126, %127 : vector<8x128xf32>
    %129 = arith.mulf %128, %94 : vector<8x128xf32>
    %cst_35 = arith.constant 2.000000e+00 : f32
    %130 = vector.broadcast %cst_35 : f32 to vector<8x128xf32>
    %131 = arith.addf %129, %130 : vector<8x128xf32>
    %cst_36 = arith.constant 3.000000e+00 : f32
    %132 = vector.broadcast %cst_36 : f32 to vector<8x128xf32>
    %133 = arith.mulf %132, %111 : vector<8x128xf32>
    %cst_37 = arith.constant 6.000000e+00 : f32
    %134 = vector.broadcast %cst_37 : f32 to vector<8x128xf32>
    %135 = arith.addf %133, %134 : vector<8x128xf32>
    %136 = arith.mulf %135, %111 : vector<8x128xf32>
    %cst_38 = arith.constant 2.000000e+00 : f32
    %137 = vector.broadcast %cst_38 : f32 to vector<8x128xf32>
    %138 = arith.addf %136, %137 : vector<8x128xf32>
    %cst_39 = arith.constant 6.000000e+00 : f32
    %139 = vector.broadcast %cst_39 : f32 to vector<8x128xf32>
    %140 = arith.addf %94, %139 : vector<8x128xf32>
    %141 = tpu.reciprocal %140 {approx = true} : vector<8x128xf32> -> vector<8x128xf32>
    %142 = arith.mulf %140, %141 : vector<8x128xf32>
    %cst_40 = arith.constant 2.000000e+00 : f32
    %143 = vector.broadcast %cst_40 : f32 to vector<8x128xf32>
    %144 = arith.subf %143, %142 : vector<8x128xf32>
    %145 = arith.mulf %141, %144 : vector<8x128xf32>
    %146 = arith.mulf %145, %145 : vector<8x128xf32>
    %147 = math.log %140 : vector<8x128xf32>
    %148 = arith.mulf %131, %123 : vector<8x128xf32>
    %149 = arith.mulf %138, %117 : vector<8x128xf32>
    %150 = arith.addf %148, %149 : vector<8x128xf32>
    %151 = tpu.reciprocal %124 {approx = true} : vector<8x128xf32> -> vector<8x128xf32>
    %152 = arith.mulf %124, %151 : vector<8x128xf32>
    %cst_41 = arith.constant 2.000000e+00 : f32
    %153 = vector.broadcast %cst_41 : f32 to vector<8x128xf32>
    %154 = arith.subf %153, %152 : vector<8x128xf32>
    %155 = arith.mulf %151, %154 : vector<8x128xf32>
    %156 = arith.mulf %150, %155 : vector<8x128xf32>
    %cst_42 = arith.constant 0.0039682542 : f32
    %157 = vector.broadcast %cst_42 : f32 to vector<8x128xf32>
    %158 = arith.mulf %146, %157 : vector<8x128xf32>
    %cst_43 = arith.constant 0.00833333377 : f32
    %159 = vector.broadcast %cst_43 : f32 to vector<8x128xf32>
    %160 = arith.subf %159, %158 : vector<8x128xf32>
    %161 = arith.mulf %146, %160 : vector<8x128xf32>
    %cst_44 = arith.constant 0.0833333358 : f32
    %162 = vector.broadcast %cst_44 : f32 to vector<8x128xf32>
    %163 = arith.subf %162, %161 : vector<8x128xf32>
    %164 = arith.mulf %146, %163 : vector<8x128xf32>
    %cst_45 = arith.constant 5.000000e-01 : f32
    %165 = vector.broadcast %cst_45 : f32 to vector<8x128xf32>
    %166 = arith.mulf %165, %145 : vector<8x128xf32>
    %167 = arith.subf %147, %166 : vector<8x128xf32>
    %168 = arith.subf %167, %164 : vector<8x128xf32>
    %169 = arith.subf %168, %156 : vector<8x128xf32>
    %170 = arith.mulf %169, %95 : vector<8x128xf32>
    %171 = arith.subf %170, %109 : vector<8x128xf32>
    %172 = arith.subf %94, %102 : vector<8x128xf32>
    %173 = arith.addf %172, %95 : vector<8x128xf32>
    %cst_46 = arith.constant 3.000000e+00 : f32
    %174 = vector.broadcast %cst_46 : f32 to vector<8x128xf32>
    %175 = arith.addf %173, %174 : vector<8x128xf32>
    %cst_47 = arith.constant 1.000000e+00 : f32
    %176 = vector.broadcast %cst_47 : f32 to vector<8x128xf32>
    %177 = arith.addf %173, %176 : vector<8x128xf32>
    %178 = arith.mulf %173, %177 : vector<8x128xf32>
    %cst_48 = arith.constant 2.000000e+00 : f32
    %179 = vector.broadcast %cst_48 : f32 to vector<8x128xf32>
    %180 = arith.addf %173, %179 : vector<8x128xf32>
    %181 = arith.mulf %178, %180 : vector<8x128xf32>
    %cst_49 = arith.constant 1.000000e+00 : f32
    %182 = vector.broadcast %cst_49 : f32 to vector<8x128xf32>
    %183 = arith.addf %175, %182 : vector<8x128xf32>
    %184 = arith.mulf %175, %183 : vector<8x128xf32>
    %cst_50 = arith.constant 2.000000e+00 : f32
    %185 = vector.broadcast %cst_50 : f32 to vector<8x128xf32>
    %186 = arith.addf %175, %185 : vector<8x128xf32>
    %187 = arith.mulf %184, %186 : vector<8x128xf32>
    %188 = arith.mulf %181, %187 : vector<8x128xf32>
    %cst_51 = arith.constant 3.000000e+00 : f32
    %189 = vector.broadcast %cst_51 : f32 to vector<8x128xf32>
    %190 = arith.mulf %189, %173 : vector<8x128xf32>
    %cst_52 = arith.constant 6.000000e+00 : f32
    %191 = vector.broadcast %cst_52 : f32 to vector<8x128xf32>
    %192 = arith.addf %190, %191 : vector<8x128xf32>
    %193 = arith.mulf %192, %173 : vector<8x128xf32>
    %cst_53 = arith.constant 2.000000e+00 : f32
    %194 = vector.broadcast %cst_53 : f32 to vector<8x128xf32>
    %195 = arith.addf %193, %194 : vector<8x128xf32>
    %cst_54 = arith.constant 3.000000e+00 : f32
    %196 = vector.broadcast %cst_54 : f32 to vector<8x128xf32>
    %197 = arith.mulf %196, %175 : vector<8x128xf32>
    %cst_55 = arith.constant 6.000000e+00 : f32
    %198 = vector.broadcast %cst_55 : f32 to vector<8x128xf32>
    %199 = arith.addf %197, %198 : vector<8x128xf32>
    %200 = arith.mulf %199, %175 : vector<8x128xf32>
    %cst_56 = arith.constant 2.000000e+00 : f32
    %201 = vector.broadcast %cst_56 : f32 to vector<8x128xf32>
    %202 = arith.addf %200, %201 : vector<8x128xf32>
    %cst_57 = arith.constant 6.000000e+00 : f32
    %203 = vector.broadcast %cst_57 : f32 to vector<8x128xf32>
    %204 = arith.addf %173, %203 : vector<8x128xf32>
    %205 = tpu.reciprocal %204 {approx = true} : vector<8x128xf32> -> vector<8x128xf32>
    %206 = arith.mulf %204, %205 : vector<8x128xf32>
    %cst_58 = arith.constant 2.000000e+00 : f32
    %207 = vector.broadcast %cst_58 : f32 to vector<8x128xf32>
    %208 = arith.subf %207, %206 : vector<8x128xf32>
    %209 = arith.mulf %205, %208 : vector<8x128xf32>
    %210 = arith.mulf %209, %209 : vector<8x128xf32>
    %211 = math.log %204 : vector<8x128xf32>
    %212 = arith.mulf %195, %187 : vector<8x128xf32>
    %213 = arith.mulf %202, %181 : vector<8x128xf32>
    %214 = arith.addf %212, %213 : vector<8x128xf32>
    %215 = tpu.reciprocal %188 {approx = true} : vector<8x128xf32> -> vector<8x128xf32>
    %216 = arith.mulf %188, %215 : vector<8x128xf32>
    %cst_59 = arith.constant 2.000000e+00 : f32
    %217 = vector.broadcast %cst_59 : f32 to vector<8x128xf32>
    %218 = arith.subf %217, %216 : vector<8x128xf32>
    %219 = arith.mulf %215, %218 : vector<8x128xf32>
    %220 = arith.mulf %214, %219 : vector<8x128xf32>
    %cst_60 = arith.constant 0.0039682542 : f32
    %221 = vector.broadcast %cst_60 : f32 to vector<8x128xf32>
    %222 = arith.mulf %210, %221 : vector<8x128xf32>
    %cst_61 = arith.constant 0.00833333377 : f32
    %223 = vector.broadcast %cst_61 : f32 to vector<8x128xf32>
    %224 = arith.subf %223, %222 : vector<8x128xf32>
    %225 = arith.mulf %210, %224 : vector<8x128xf32>
    %cst_62 = arith.constant 0.0833333358 : f32
    %226 = vector.broadcast %cst_62 : f32 to vector<8x128xf32>
    %227 = arith.subf %226, %225 : vector<8x128xf32>
    %228 = arith.mulf %210, %227 : vector<8x128xf32>
    %cst_63 = arith.constant 5.000000e-01 : f32
    %229 = vector.broadcast %cst_63 : f32 to vector<8x128xf32>
    %230 = arith.mulf %229, %209 : vector<8x128xf32>
    %231 = arith.subf %211, %230 : vector<8x128xf32>
    %232 = arith.subf %231, %228 : vector<8x128xf32>
    %233 = arith.subf %232, %220 : vector<8x128xf32>
    %cst_64 = arith.constant 7.93650805E-4 : f32
    %234 = vector.broadcast %cst_64 : f32 to vector<8x128xf32>
    %235 = arith.mulf %210, %234 : vector<8x128xf32>
    %cst_65 = arith.constant -0.00277777785 : f32
    %236 = vector.broadcast %cst_65 : f32 to vector<8x128xf32>
    %237 = arith.addf %236, %235 : vector<8x128xf32>
    %238 = arith.mulf %210, %237 : vector<8x128xf32>
    %cst_66 = arith.constant 0.0833333358 : f32
    %239 = vector.broadcast %cst_66 : f32 to vector<8x128xf32>
    %240 = arith.addf %239, %238 : vector<8x128xf32>
    %241 = arith.mulf %209, %240 : vector<8x128xf32>
    %cst_67 = arith.constant 5.000000e-01 : f32
    %242 = vector.broadcast %cst_67 : f32 to vector<8x128xf32>
    %243 = arith.subf %204, %242 : vector<8x128xf32>
    %244 = arith.mulf %243, %211 : vector<8x128xf32>
    %245 = arith.subf %244, %204 : vector<8x128xf32>
    %cst_68 = arith.constant 0.918938517 : f32
    %246 = vector.broadcast %cst_68 : f32 to vector<8x128xf32>
    %247 = arith.addf %245, %246 : vector<8x128xf32>
    %248 = arith.addf %247, %241 : vector<8x128xf32>
    %249 = math.log %188 : vector<8x128xf32>
    %250 = arith.subf %248, %249 : vector<8x128xf32>
    %cst_69 = arith.constant 1.000000e+00 : f32
    %251 = vector.broadcast %cst_69 : f32 to vector<8x128xf32>
    %252 = arith.subf %251, %85 : vector<8x128xf32>
    %253 = vector.extract_strided_slice %81 {offsets = [0, 0, 0], sizes = [1, 8, 128], strides = [1, 1, 1]} : vector<2x8x128xf32> to vector<1x8x128xf32>
    %254 = vector.shape_cast %253 : vector<1x8x128xf32> to vector<8x128xf32>
    %255 = arith.mulf %252, %254 : vector<8x128xf32>
    %cst_70 = arith.constant 1.000000e+00 : f32
    %256 = vector.broadcast %cst_70 : f32 to vector<8x128xf32>
    %257 = arith.subf %256, %89 : vector<8x128xf32>
    %258 = vector.extract_strided_slice %81 {offsets = [1, 0, 0], sizes = [1, 8, 128], strides = [1, 1, 1]} : vector<2x8x128xf32> to vector<1x8x128xf32>
    %259 = vector.shape_cast %258 : vector<1x8x128xf32> to vector<8x128xf32>
    %260 = arith.mulf %257, %259 : vector<8x128xf32>
    %261 = arith.addf %255, %260 : vector<8x128xf32>
    %cst_71 = arith.constant 1.000000e+00 : f32
    %262 = vector.broadcast %cst_71 : f32 to vector<8x128xf32>
    %263 = arith.subf %262, %85 : vector<8x128xf32>
    %264 = vector.extract_strided_slice %3 {offsets = [0, 0, 0], sizes = [1, 8, 128], strides = [1, 1, 1]} : vector<2x8x128xf32> to vector<1x8x128xf32>
    %265 = vector.shape_cast %264 : vector<1x8x128xf32> to vector<8x128xf32>
    %cst_72 = arith.constant 1.000000e+00 : f32
    %266 = vector.broadcast %cst_72 : f32 to vector<8x128xf32>
    %267 = arith.subf %265, %266 : vector<8x128xf32>
    %268 = arith.mulf %263, %267 : vector<8x128xf32>
    %269 = vector.extract_strided_slice %64 {offsets = [0, 0, 0], sizes = [1, 8, 128], strides = [1, 1, 1]} : vector<2x8x128xf32> to vector<1x8x128xf32>
    %270 = vector.shape_cast %269 : vector<1x8x128xf32> to vector<8x128xf32>
    %271 = arith.subf %270, %233 : vector<8x128xf32>
    %272 = arith.mulf %268, %271 : vector<8x128xf32>
    %cst_73 = arith.constant 1.000000e+00 : f32
    %273 = vector.broadcast %cst_73 : f32 to vector<8x128xf32>
    %274 = arith.subf %273, %89 : vector<8x128xf32>
    %275 = vector.extract_strided_slice %3 {offsets = [1, 0, 0], sizes = [1, 8, 128], strides = [1, 1, 1]} : vector<2x8x128xf32> to vector<1x8x128xf32>
    %276 = vector.shape_cast %275 : vector<1x8x128xf32> to vector<8x128xf32>
    %cst_74 = arith.constant 1.000000e+00 : f32
    %277 = vector.broadcast %cst_74 : f32 to vector<8x128xf32>
    %278 = arith.subf %276, %277 : vector<8x128xf32>
    %279 = arith.mulf %274, %278 : vector<8x128xf32>
    %280 = vector.extract_strided_slice %64 {offsets = [1, 0, 0], sizes = [1, 8, 128], strides = [1, 1, 1]} : vector<2x8x128xf32> to vector<1x8x128xf32>
    %281 = vector.shape_cast %280 : vector<1x8x128xf32> to vector<8x128xf32>
    %282 = arith.subf %281, %233 : vector<8x128xf32>
    %283 = arith.mulf %279, %282 : vector<8x128xf32>
    %284 = arith.addf %272, %283 : vector<8x128xf32>
    %285 = arith.subf %250, %261 : vector<8x128xf32>
    %286 = arith.addf %284, %285 : vector<8x128xf32>
    %cst_75 = arith.constant 0.000000e+00 : f32
    %287 = vector.broadcast %cst_75 : f32 to vector<8x128xf32>
    %288 = arith.addf %286, %287 : vector<8x128xf32>
    %c0_76 = arith.constant 0 : index
    %289 = memref.load %arg2[%c0_76] : memref<1xf32, #tpu.memory_space<smem>>
    %290 = vector.broadcast %289 : f32 to vector<8x128xf32>
    %291 = arith.mulf %290, %288 : vector<8x128xf32>
    %292 = arith.addf %171, %291 : vector<8x128xf32>
    %c0_77 = arith.constant 0 : index
    %c0_78 = arith.constant 0 : index
    %293 = vector.load %arg5[%c0_77, %c0_78] : memref<8x128xf32, #tpu.memory_space<vmem>>, vector<8x128xf32>
    %294 = vector.shape_cast %292 : vector<8x128xf32> to vector<1x8x128xf32>
    %cst_79 = arith.constant dense<0.000000e+00> : vector<8x128xf32>
    %295 = vector.multi_reduction <add>, %294, %cst_79 [0] : vector<1x8x128xf32> to vector<8x128xf32>
    %296 = arith.addf %293, %295 : vector<8x128xf32>
    %c0_80 = arith.constant 0 : index
    %c0_81 = arith.constant 0 : index
    %297 = vector.load %arg5[%c0_80, %c0_81] : memref<8x128xf32, #tpu.memory_space<vmem>>, vector<8x128xf32>
    tpu.vector_store %arg5[%c0_80, %c0_81], %296 {strides = array<i32>} : memref<8x128xf32, #tpu.memory_space<vmem>>, vector<8x128xf32>,
    return
  }
  func.func @transform_0(%arg0: i32, %arg1: i32) -> i32 {
    %c0_i32 = arith.constant 0 : i32
    %c0_i32_0 = arith.constant 0 : i32
    return %c0_i32 : i32
  }
  func.func @transform_1(%arg0: i32, %arg1: i32) -> (i32, i32, i32) {
    %c1_i32 = arith.constant 1 : i32
    %0 = arith.muli %arg0, %c1_i32 : i32
    %1 = arith.addi %0, %arg1 : i32
    %c0_i32 = arith.constant 0 : i32
    %c0_i32_0 = arith.constant 0 : i32
    %c0_i32_1 = arith.constant 0 : i32
    return %c0_i32, %1, %c0_i32_0 : i32, i32, i32
  }
  func.func @transform_2(%arg0: i32, %arg1: i32) -> (i32, i32) {
    %c1_i32 = arith.constant 1 : i32
    %0 = arith.muli %arg0, %c1_i32 : i32
    %1 = arith.addi %0, %arg1 : i32
    %c0_i32 = arith.constant 0 : i32
    %c0_i32_0 = arith.constant 0 : i32
    return %1, %c0_i32 : i32, i32
  }
  func.func @transform_3(%arg0: i32, %arg1: i32) -> (i32, i32) {
    %c0_i32 = arith.constant 0 : i32
    %c0_i32_0 = arith.constant 0 : i32
    return %arg0, %c0_i32 : i32, i32
  }
}

</mosaic_0001>

<llo_original>
// kernel: tpu_custom_call.1
$region0: #{tpu_custom_call.1}
  #allocation0 [shape = 'u32[]', space=smem, size = 0x4, offset = 0x4, fixed_abs, tag = 'smem constant byte address 0x4 - core index']
  #allocation1 [shape = 'u32[144,128]{1,0:T(1,128)}', space=vmem, size = 0x12000, scoped, tag = 'internal scratch']
  #allocation2 [shape = 'f32[1]{0:T(128)S(6)}', space=smem, size = 0x200, scoped, tag = 'scoped memory for tpu_custom_call.1']
  %s0 = inlined_call_operand.<no memory space> [shape: f32[1], index: 0, kind: input, shape index: {}]
  %s1 = inlined_call_operand.hbm [shape: f32[2,8,128], index: 1, kind: input, shape index: {}]
  %s2 = inlined_call_operand.hbm [shape: s32[8,128], index: 2, kind: input, shape index: {}]
  %s3 = inlined_call_operand.hbm [shape: f32[8,128], index: 3, kind: output, shape index: {}]
  %s4 = sld [smem:[#allocation0]]
  $region34: #{tpu_custom_call.1} parent=0
    _
  %s6 = ssub.s32 1, %s4
  %s7 = scalar_select 0, %s6, %s4
  %8 = sst [smem:[#allocation2]] %s0
  $region1: #{tpu_custom_call.1} parent=0
    #allocation3 [shape = 'u8[8192]{0}', space=vmem, size = 0x2000, scoped, tag = 'input window, operand 1, single buffered']
    #allocation4 [shape = 's32[1]{0}', space=sflag, size = 0x4, scoped, tag = 'scoped memory for tpu_custom_call.1']
    #allocation5 [shape = 's32[1]{0}', space=sflag, size = 0x4, scoped, tag = 'scoped memory for tpu_custom_call.1']
    #allocation6 [shape = 'u8[4096]{0}', space=vmem, size = 0x1000, scoped, tag = 'input window, operand 2, single buffered']
    #allocation7 [shape = 's32[1]{0}', space=sflag, size = 0x4, scoped, tag = 'scoped memory for tpu_custom_call.1']
    #allocation8 [shape = 'u8[4096]{0}', space=vmem, size = 0x1000, scoped, tag = 'output window, operand 0, single buffered']
    %9 = vsyncpa [#allocation4], 0
    %10 = vsyncpa [#allocation7], 0
    %11 = vsyncpa [#allocation5], 0
    // Predicated region
    $region2: #{tpu_custom_call.1} parent=1 // pred_check
      _
    $region3: #{tpu_custom_call.1} parent=1 // pred_check_branch
      %13 = sbr.rel (0) target = $region5
    $region4: #{tpu_custom_call.1} parent=1 // pred_region
      _
    $region5: #{tpu_custom_call.1} parent=1 // pred_fallthru
      _
    // Predicated region
    $region6: #{tpu_custom_call.1} parent=1 // pred_check
      _
    $region7: #{tpu_custom_call.1} parent=1 // pred_check_branch
      %15 = sbr.rel (0) target = $region9
    $region8: #{tpu_custom_call.1} parent=1 // pred_region
      %s16 = sadd.s32 0, 0
      %s18 = ssub.s32 256, 256
      %19 = vsyncadd [#allocation4], %s18
      %s20 = smul.addr %s16, 128
      %s21 = scalar_lea.hbm %s1, %s20
      %s22 = sshll.u32 [#allocation3], 4
      %s23 = int_to_ptr.vmem [resolvable:$true] %s22
      %28 = dma.hbm_to_vmem [thread:$0]  %s21, 256, %s23, [#allocation4], 128, 128, 8
    $region9: #{tpu_custom_call.1} parent=1 // pred_fallthru
      _
    // Predicated region
    $region10: #{tpu_custom_call.1} parent=1 // pred_check
      _
    $region11: #{tpu_custom_call.1} parent=1 // pred_check_branch
      %30 = sbr.rel (0) target = $region13
    $region12: #{tpu_custom_call.1} parent=1 // pred_region
      %s31 = sadd.s32 0, 0
      %s33 = ssub.s32 128, 128
      %34 = vsyncadd [#allocation7], %s33
      %s35 = smul.addr %s31, 128
      %s36 = scalar_lea.hbm %s2, %s35
      %s38 = sshll.u32 [#allocation6], 4
      %s39 = int_to_ptr.vmem [resolvable:$true] %s38
      %41 = dma.hbm_to_vmem [thread:$0]  %s36, 128, %s39, [#allocation7]
    $region13: #{tpu_custom_call.1} parent=1 // pred_fallthru
      _
    // Predicated region
    $region14: #{tpu_custom_call.1} parent=1 // pred_check
      _
    $region15: #{tpu_custom_call.1} parent=1 // pred_check_branch
      %43 = sbr.rel (0) target = $region17
    $region16: #{tpu_custom_call.1} parent=1 // pred_region
      %44 = dma.done [#allocation4], 256
    $region17: #{tpu_custom_call.1} parent=1 // pred_fallthru
      _
    // Predicated region
    $region18: #{tpu_custom_call.1} parent=1 // pred_check
      _
    $region19: #{tpu_custom_call.1} parent=1 // pred_check_branch
      %46 = sbr.rel (0) target = $region21
    $region20: #{tpu_custom_call.1} parent=1 // pred_region
      %47 = dma.done [#allocation7], 128
    $region21: #{tpu_custom_call.1} parent=1 // pred_fallthru
      _
    %s48 = sadd.s32 0, 0
    %s49 = sadd.s32 0, 0
    %p50 = scmp.eq.s32.totalorder 0, 0
    // Predicated region
    $region22: #{tpu_custom_call.1} parent=1 // pred_check
      %p51 = pneg %p50
    $region23: #{tpu_custom_call.1} parent=1 // pred_check_branch
      %53 = sbr.rel (%p51) target = $region25
    $region24: #{tpu_custom_call.1} parent=1 // pred_region
      %54 = vst [vmem:[#allocation8] sm:$0xff] 0.0
    $region25: #{tpu_custom_call.1} parent=1 // pred_fallthru
      _
    %v55 = vld [vmem:[#allocation3] sm:$0xff]
    %v56 = vld [vmem:[#allocation3 + $0x8] sm:$0xff]
    %v57 = vld [vmem:[#allocation6] sm:$0xff]
    %v58 = vadd.f32 %v55, 3.0
    %v59 = vadd.f32 %v56, 3.0
    %v60 = vadd.f32 %v55, 1.0
    %v61 = vadd.f32 %v56, 1.0
    %v62 = vmul.f32 %v55, %v60
    %v63 = vmul.f32 %v56, %v61
    %v64 = vadd.f32 %v55, 2.0
    %v65 = vadd.f32 %v56, 2.0
    %v66 = vmul.f32 %v62, %v64
    %v67 = vmul.f32 %v63, %v65
    %v68 = vadd.f32 %v58, 1.0
    %v69 = vadd.f32 %v59, 1.0
    %v70 = vmul.f32 %v58, %v68
    %v71 = vmul.f32 %v59, %v69
    %v72 = vadd.f32 %v58, 2.0
    %v73 = vadd.f32 %v59, 2.0
    %v74 = vmul.f32 %v70, %v72
    %v75 = vmul.f32 %v71, %v73
    %v76 = vmul.f32 %v66, %v74
    %v77 = vmul.f32 %v67, %v75
    %v78 = vmul.f32 %v55, 3.0
    %v79 = vmul.f32 %v56, 3.0
    %v80 = vadd.f32 %v78, 6.0
    %v81 = vadd.f32 %v79, 6.0
    %v82 = vmul.f32 %v80, %v55
    %v83 = vmul.f32 %v81, %v56
    %v84 = vadd.f32 %v82, 2.0
    %v85 = vadd.f32 %v83, 2.0
    %v86 = vmul.f32 %v58, 3.0
    %v87 = vmul.f32 %v59, 3.0
    %v88 = vadd.f32 %v86, 6.0
    %v89 = vadd.f32 %v87, 6.0
    %v90 = vmul.f32 %v88, %v58
    %v91 = vmul.f32 %v89, %v59
    %v92 = vadd.f32 %v90, 2.0
    %v93 = vadd.f32 %v91, 2.0
    %v94 = vadd.f32 %v55, 6.0
    %v95 = vadd.f32 %v56, 6.0
    %v96 = vrcp.pop %v94
    %v97 = vrcp.pop %v95
    %v98 = vmul.f32 %v94, %v96
    %v99 = vmul.f32 %v95, %v97
    %v100 = vsub.f32 2.0, %v98
    %v101 = vsub.f32 2.0, %v99
    %v102 = vmul.f32 %v96, %v100
    %v103 = vmul.f32 %v97, %v101
    %v104 = vmul.f32 %v102, %v102
    %v105 = vmul.f32 %v103, %v103
    %v106 = vlog2.pop %v94
    %v107 = vmul.f32 %v106, 0.6931472
    %v108 = vlog2.pop %v95
    %v109 = vmul.f32 %v108, 0.6931472
    %v110 = vmul.f32 %v84, %v74
    %v111 = vmul.f32 %v85, %v75
    %v112 = vmul.f32 %v92, %v66
    %v113 = vmul.f32 %v93, %v67
    %v114 = vadd.f32 %v110, %v112
    %v115 = vadd.f32 %v111, %v113
    %v116 = vrcp.pop %v76
    %v117 = vrcp.pop %v77
    %v118 = vmul.f32 %v76, %v116
    %v119 = vmul.f32 %v77, %v117
    %v120 = vsub.f32 2.0, %v118
    %v121 = vsub.f32 2.0, %v119
    %v122 = vmul.f32 %v116, %v120
    %v123 = vmul.f32 %v117, %v121
    %v124 = vmul.f32 %v114, %v122
    %v125 = vmul.f32 %v115, %v123
    %v126 = vmul.f32 %v104, 0.003968254
    %v127 = vmul.f32 %v105, 0.003968254
    %v128 = vsub.f32 0.008333334, %v126
    %v129 = vsub.f32 0.008333334, %v127
    %v130 = vmul.f32 %v104, %v128
    %v131 = vmul.f32 %v105, %v129
    %v132 = vsub.f32 0.083333336, %v130
    %v133 = vsub.f32 0.083333336, %v131
    %v134 = vmul.f32 %v104, %v132
    %v135 = vmul.f32 %v105, %v133
    %v136 = vmul.f32 %v102, 0.5
    %v137 = vmul.f32 %v103, 0.5
    %v138 = vsub.f32 %v107, %v136
    %v139 = vsub.f32 %v109, %v137
    %v140 = vsub.f32 %v138, %v134
    %v141 = vsub.f32 %v139, %v135
    %v142 = vsub.f32 %v140, %v124
    %v143 = vsub.f32 %v141, %v125
    %v144 = vmul.f32 %v104, 0.0007936508
    %v145 = vmul.f32 %v105, 0.0007936508
    %v146 = vadd.f32 %v144, -0.0027777778
    %v147 = vadd.f32 %v145, -0.0027777778
    %v148 = vmul.f32 %v104, %v146
    %v149 = vmul.f32 %v105, %v147
    %v150 = vadd.f32 %v148, 0.083333336
    %v151 = vadd.f32 %v149, 0.083333336
    %v152 = vmul.f32 %v102, %v150
    %v153 = vmul.f32 %v103, %v151
    %v154 = vsub.f32 %v94, 0.5
    %v155 = vsub.f32 %v95, 0.5
    %v156 = vmul.f32 %v154, %v107
    %v157 = vmul.f32 %v155, %v109
    %v158 = vsub.f32 %v156, %v94
    %v159 = vsub.f32 %v157, %v95
    %v160 = vadd.f32 %v158, 0.9189385
    %v161 = vadd.f32 %v159, 0.9189385
    %v162 = vadd.f32 %v160, %v152
    %v163 = vadd.f32 %v161, %v153
    %v164 = vlog2.pop %v76
    %v165 = vmul.f32 %v164, 0.6931472
    %v166 = vlog2.pop %v77
    %v167 = vmul.f32 %v166, 0.6931472
    %v168 = vsub.f32 %v162, %v165
    %v169 = vsub.f32 %v163, %v167
    %vm170 = vcmp.eq.s32.totalorder %v57, 0
    %v171 = vsel %vm170, 1, 0
    %v172 = vcvt.s32.f32 %v171
    %vm173 = vcmp.eq.s32.totalorder %v57, 1
    %v174 = vsel %vm173, 1, 0
    %v175 = vcvt.s32.f32 %v174
    %v176 = vadd.f32 %v55, %v56
    %v177 = vadd.f32 %v172, %v175
    %v178 = vmul.f32 %v172, %v55
    %v179 = vmul.f32 %v175, %v56
    %v180 = vadd.f32 %v178, %v179
    %v181 = vmul.f32 %v172, %v142
    %v182 = vmul.f32 %v175, %v143
    %v183 = vadd.f32 %v181, %v182
    %v184 = vadd.f32 %v176, 3.0
    %v185 = vadd.f32 %v176, 1.0
    %v186 = vmul.f32 %v176, %v185
    %v187 = vadd.f32 %v176, 2.0
    %v188 = vmul.f32 %v186, %v187
    %v189 = vadd.f32 %v184, 1.0
    %v190 = vmul.f32 %v184, %v189
    %v191 = vadd.f32 %v184, 2.0
    %v192 = vmul.f32 %v190, %v191
    %v193 = vmul.f32 %v188, %v192
    %v194 = vmul.f32 %v176, 3.0
    %v195 = vadd.f32 %v194, 6.0
    %v196 = vmul.f32 %v195, %v176
    %v197 = vadd.f32 %v196, 2.0
    %v198 = vmul.f32 %v184, 3.0
    %v199 = vadd.f32 %v198, 6.0
    %v200 = vmul.f32 %v199, %v184
    %v201 = vadd.f32 %v200, 2.0
    %v202 = vadd.f32 %v176, 6.0
    %v203 = vrcp.pop %v202
    %v204 = vmul.f32 %v202, %v203
    %v205 = vsub.f32 2.0, %v204
    %v206 = vmul.f32 %v203, %v205
    %v207 = vmul.f32 %v206, %v206
    %v208 = vlog2.pop %v202
    %v209 = vmul.f32 %v208, 0.6931472
    %v210 = vmul.f32 %v197, %v192
    %v211 = vmul.f32 %v201, %v188
    %v212 = vadd.f32 %v210, %v211
    %v213 = vrcp.pop %v193
    %v214 = vmul.f32 %v193, %v213
    %v215 = vsub.f32 2.0, %v214
    %v216 = vmul.f32 %v213, %v215
    %v217 = vmul.f32 %v212, %v216
    %v218 = vmul.f32 %v207, 0.003968254
    %v219 = vsub.f32 0.008333334, %v218
    %v220 = vmul.f32 %v207, %v219
    %v221 = vsub.f32 0.083333336, %v220
    %v222 = vmul.f32 %v207, %v221
    %v223 = vmul.f32 %v206, 0.5
    %v224 = vsub.f32 %v209, %v223
    %v225 = vsub.f32 %v224, %v222
    %v226 = vsub.f32 %v225, %v217
    %v227 = vmul.f32 %v226, %v177
    %v228 = vsub.f32 %v227, %v183
    %v229 = vsub.f32 %v176, %v180
    %v230 = vadd.f32 %v229, %v177
    %v231 = vadd.f32 %v230, 3.0
    %v232 = vadd.f32 %v230, 1.0
    %v233 = vmul.f32 %v230, %v232
    %v234 = vadd.f32 %v230, 2.0
    %v235 = vmul.f32 %v233, %v234
    %v236 = vadd.f32 %v231, 1.0
    %v237 = vmul.f32 %v231, %v236
    %v238 = vadd.f32 %v231, 2.0
    %v239 = vmul.f32 %v237, %v238
    %v240 = vmul.f32 %v235, %v239
    %v241 = vmul.f32 %v230, 3.0
    %v242 = vadd.f32 %v241, 6.0
    %v243 = vmul.f32 %v242, %v230
    %v244 = vadd.f32 %v243, 2.0
    %v245 = vmul.f32 %v231, 3.0
    %v246 = vadd.f32 %v245, 6.0
    %v247 = vmul.f32 %v246, %v231
    %v248 = vadd.f32 %v247, 2.0
    %v249 = vadd.f32 %v230, 6.0
    %v250 = vrcp.pop %v249
    %v251 = vmul.f32 %v249, %v250
    %v252 = vsub.f32 2.0, %v251
    %v253 = vmul.f32 %v250, %v252
    %v254 = vmul.f32 %v253, %v253
    %v255 = vlog2.pop %v249
    %v256 = vmul.f32 %v255, 0.6931472
    %v257 = vmul.f32 %v244, %v239
    %v258 = vmul.f32 %v248, %v235
    %v259 = vadd.f32 %v257, %v258
    %v260 = vrcp.pop %v240
    %v261 = vmul.f32 %v240, %v260
    %v262 = vsub.f32 2.0, %v261
    %v263 = vmul.f32 %v260, %v262
    %v264 = vmul.f32 %v259, %v263
    %v265 = vmul.f32 %v254, 0.003968254
    %v266 = vsub.f32 0.008333334, %v265
    %v267 = vmul.f32 %v254, %v266
    %v268 = vsub.f32 0.083333336, %v267
    %v269 = vmul.f32 %v254, %v268
    %v270 = vmul.f32 %v253, 0.5
    %v271 = vsub.f32 %v256, %v270
    %v272 = vsub.f32 %v271, %v269
    %v273 = vsub.f32 %v272, %v264
    %v274 = vmul.f32 %v254, 0.0007936508
    %v275 = vadd.f32 %v274, -0.0027777778
    %v276 = vmul.f32 %v254, %v275
    %v277 = vadd.f32 %v276, 0.083333336
    %v278 = vmul.f32 %v253, %v277
    %v279 = vsub.f32 %v249, 0.5
    %v280 = vmul.f32 %v279, %v256
    %v281 = vsub.f32 %v280, %v249
    %v282 = vadd.f32 %v281, 0.9189385
    %v283 = vadd.f32 %v282, %v278
    %v284 = vlog2.pop %v240
    %v285 = vmul.f32 %v284, 0.6931472
    %v286 = vsub.f32 %v283, %v285
    %v287 = vsub.f32 1.0, %v172
    %v288 = vmul.f32 %v287, %v168
    %v289 = vsub.f32 1.0, %v175
    %v290 = vmul.f32 %v289, %v169
    %v291 = vadd.f32 %v288, %v290
    %v292 = vsub.f32 %v55, 1.0
    %v293 = vmul.f32 %v287, %v292
    %v294 = vsub.f32 %v142, %v273
    %v295 = vmul.f32 %v293, %v294
    %v296 = vsub.f32 %v56, 1.0
    %v297 = vmul.f32 %v289, %v296
    %v298 = vsub.f32 %v143, %v273
    %v299 = vmul.f32 %v297, %v298
    %v300 = vadd.f32 %v295, %v299
    %v301 = vsub.f32 %v286, %v291
    %v302 = vadd.f32 %v300, %v301
    %v303 = vadd.f32 %v302, 0.0
    %s304 = sld [smem:[#allocation2]]
    %v305 = vstv %s304
    %v306 = vmul.f32 %v305, %v303
    %v307 = vadd.f32 %v228, %v306
    %v308 = vld [vmem:[#allocation8] sm:$0xff]
    %v309 = vadd.f32 %v307, 0.0
    %v310 = vadd.f32 %v308, %v309
    %311 = vst [vmem:[#allocation8] sm:$0xff] %v310
    // Predicated region
    $region26: #{tpu_custom_call.1} parent=1 // pred_check
      _
    $region27: #{tpu_custom_call.1} parent=1 // pred_check_branch
      %313 = sbr.rel (0) target = $region29
    $region28: #{tpu_custom_call.1} parent=1 // pred_region
      %s315 = ssub.s32 128, 128
      %316 = vsyncadd [#allocation5], %s315
      %s318 = sshll.u32 [#allocation8], 4
      %s319 = int_to_ptr.vmem [resolvable:$true] %s318
      %321 = dma.vmem_to_hbm [thread:$0]  %s319, 128, %s3, [#allocation5]
    $region29: #{tpu_custom_call.1} parent=1 // pred_fallthru
      _
    // Predicated region
    $region30: #{tpu_custom_call.1} parent=1 // pred_check
      _
    $region31: #{tpu_custom_call.1} parent=1 // pred_check_branch
      %323 = sbr.rel (0) target = $region33
    $region32: #{tpu_custom_call.1} parent=1 // pred_region
      %324 = dma.done [#allocation5], 128
    $region33: #{tpu_custom_call.1} parent=1 // pred_fallthru
      _
    %325 = vsyncpa [#allocation4], 1
    %326 = vsyncpa [#allocation7], 1
    %327 = vsyncpa [#allocation5], 1

</llo_original>
